<compile_context>
chip_gen: v5e
topology: v5e:2x2
jax: 0.10.0
libtpu: 0.0.40
codegen_flags: <defaults>
</compile_context>

<pallas_src>
import jax
import jax.numpy as jnp
from jax import lax
from jax.experimental import pallas as pl
from jax.experimental.pallas import tpu as pltpu


def _round_up(x, m):
    return ((x + m - 1) // m) * m


# ---------------------------------------------------------------------------
# Kernel 1 (one-shot): P = [ W_0 W_0^T | W_1 W_1^T | ... ]   -> (D_in, P_LANES)
# ---------------------------------------------------------------------------
def build_p_kernel(w_ref, p_ref):
    # w_ref: (M, D_in, D_out); p_ref: (D_in, P_LANES), P_LANES = round_up(M*D_in, 128)
    m, d_in, _ = w_ref.shape
    p_lanes = p_ref.shape[-1]
    w = w_ref[...]
    # One batched dot_general: batch dim m, contract D_out against D_out.
    # p_heads[h, j, i] = sum_o W[h, j, o] * W[h, i, o]   (no transpose materialized)
    p_heads = lax.dot_general(
        w, w,
        dimension_numbers=(((2,), (2,)), ((0,), (0,))),
        preferred_element_type=jnp.float32,
    )  # (M, D_in, D_in)
    if p_lanes != m * d_in:
        p_ref[...] = jnp.zeros_like(p_ref)  # zero the lane padding once
    # Per-head stores into static lane slices (no concatenate / lane shuffles).
    for h in range(m):  # static unroll; M is small
        p_ref[:, h * d_in:(h + 1) * d_in] = p_heads[h]


# ---------------------------------------------------------------------------
# Kernel 2 (streamed hot path): out_tile = X_tile @ P, with P VMEM-resident
# ---------------------------------------------------------------------------
def xp_stream_kernel(p_ref, x_ref, o_ref):
    # p_ref: (D_in, P_LANES)  resident across all grid steps (index_map -> (0, 0))
    # x_ref: (TILE_N, D_in)   streamed
    # o_ref: (TILE_N, P_LANES) lane-dense output slab
    o_ref[...] = jnp.dot(
        x_ref[...], p_ref[...], preferred_element_type=jnp.float32
    ).astype(o_ref.dtype)


# ---------------------------------------------------------------------------
# Wrapper
# ---------------------------------------------------------------------------
def projection_rnn_forward(weight, x, *, out_dtype=jnp.float32,
                           vmem_budget_bytes=24 << 20):
    """weight: (M, D_in, D_out), x: (N, D_in)  ->  (N, M, D_in)."""
    M, D_in, D_out = weight.shape
    N, D_in_x = x.shape
    assert D_in_x == D_in

    weight = weight.astype(jnp.float32)
    x = x.astype(jnp.float32)

    p_lanes = _round_up(M * D_in, 128)  # lane-dense slab -> unmasked stores
    out_itemsize = jnp.dtype(out_dtype).itemsize

    # ---- one-shot P build (tiny; launch cost irrelevant, runs once) --------
    p = pl.pallas_call(
        build_p_kernel,
        out_shape=jax.ShapeDtypeStruct((D_in, p_lanes), jnp.float32),
        in_specs=[pl.BlockSpec(memory_space=pltpu.MemorySpace.VMEM)],
        out_specs=pl.BlockSpec(memory_space=pltpu.MemorySpace.VMEM),
        cost_estimate=pl.CostEstimate(
            flops=2 * M * D_in * D_in * D_out,
            transcendentals=0,
            bytes_accessed=4 * (M * D_in * D_out + D_in * p_lanes),
        ),
    )(weight)

    # ---- choose TILE_N against the VMEM budget (v7x: 64 MiB phys / 32 scoped) ----
    def _working_set(t):
        return (2 * t * D_in * 4                    # double-buffered X tile (f32)
                + 2 * t * p_lanes * out_itemsize    # double-buffered out tile
                + 2 * D_in * p_lanes * 4)           # resident P (pipeline buffers)

    tile_n = min(512, _round_up(N, 8))              # >=512 rows when N is large
    while tile_n > 8 and _working_set(tile_n) > vmem_budget_bytes:
        tile_n = max(8, _round_up(tile_n // 2, 8))
    vmem_limit = int(min(max(2 * _working_set(tile_n), 4 << 20), 32 << 20))

    n_pad = _round_up(N, tile_n)
    x_padded = x if n_pad == N else jnp.pad(x, ((0, n_pad - N), (0, 0)))
    grid = (n_pad // tile_n,)

    out_flat = pl.pallas_call(
        xp_stream_kernel,
        out_shape=jax.ShapeDtypeStruct((n_pad, p_lanes), out_dtype),
        grid_spec=pltpu.PrefetchScalarGridSpec(
            num_scalar_prefetch=0,
            grid=grid,
            in_specs=[
                pl.BlockSpec((D_in, p_lanes), lambda i: (0, 0)),  # P: VMEM-resident
                pl.BlockSpec((tile_n, D_in), lambda i: (i, 0)),   # X: streamed
            ],
            out_specs=pl.BlockSpec((tile_n, p_lanes), lambda i: (i, 0)),
        ),
        compiler_params=pltpu.CompilerParams(
            dimension_semantics=("parallel",),       # both TCs on v7x
            vmem_limit_bytes=vmem_limit,
        ),
        cost_estimate=pl.CostEstimate(
            flops=2 * n_pad * D_in * p_lanes,
            transcendentals=0,
            bytes_accessed=(4 * D_in * p_lanes + 4 * n_pad * D_in
                            + out_itemsize * n_pad * p_lanes),
        ),
    )(p, x_padded)

    # Strip row/lane padding (no-op slices when already aligned), then a
    # layout-free reshape (N, M*D_in) -> (N, M, D_in)  == torch permute(2, 0, 1).
    out_flat = out_flat[:N, :M * D_in]
    return out_flat.reshape(N, M, D_in)


def projection_rnn_reference(weight, x):
    # pure-JAX reference of the PyTorch forward
    a = jnp.einsum("mio,ni->mon", weight, x)   # tensordot(W, X, [[1],[1]])
    b = jnp.einsum("mio,mon->min", weight, a)  # bmm(W, a)
    return jnp.transpose(b, (2, 0, 1))         # permute(2, 0, 1)


if __name__ == "__main__":
    M, D_in, D_out = 4, 32, 16

    key = jax.random.PRNGKey(0)
    kw, kx1, kx2 = jax.random.split(key, 3)
    # nn.init.normal_(weight, std=0.01)
    weight = (0.01 * jax.random.normal(kw, (M, D_in, D_out))).astype(jnp.float32)

    # Canonical small shape (single tile, no padding).
    x_small = jax.random.normal(kx1, (8, D_in)).astype(jnp.float32)
    out_small = jax.block_until_ready(projection_rnn_forward(weight, x_small))
    ref_small = projection_rnn_reference(weight, x_small)
    assert out_small.shape == (8, M, D_in)
    assert jnp.allclose(out_small, ref_small, atol=1e-5, rtol=1e-5), "small-N mismatch"

    # Exercise the streamed N-tiled path: 512-row tiles, row padding, resident P,
    # "parallel" grid axis.
    x_big = jax.random.normal(kx2, (600, D_in)).astype(jnp.float32)
    out_big = jax.block_until_ready(projection_rnn_forward(weight, x_big))
    ref_big = projection_rnn_reference(weight, x_big)
    assert out_big.shape == (600, M, D_in)
    assert jnp.allclose(out_big, ref_big, atol=1e-5, rtol=1e-5), "tiled-N mismatch"

    print("KERNEL_OK")
</pallas_src>

<mosaic_0001>
module attributes {stable_mosaic.version = 11 : i64} {
  func.func @build_p_kernel(%arg0: memref<4x32x16xf32, #tpu.memory_space<vmem>>, %arg1: memref<32x128xf32, #tpu.memory_space<vmem>>) attributes {dimension_semantics = [], scalar_prefetch = 0 : i64, scratch_operands = 0 : i64, tpu.core_type = #tpu.core_type<tc>} {
    %c0 = arith.constant 0 : index
    %c0_0 = arith.constant 0 : index
    %c0_1 = arith.constant 0 : index
    %0 = vector.load %arg0[%c0, %c0_0, %c0_1] : memref<4x32x16xf32, #tpu.memory_space<vmem>>, vector<4x32x16xf32>
    %cst = arith.constant dense<0.000000e+00> : vector<4x32x32xf32>
    %1 = tpu.matmul %0, %0, %cst {dimension_numbers = #tpu.dot_dimension_numbers<[2], [2], [1], [1], [0, 0, 0, 1, 1, 1], [0], [0]>} : vector<4x32x16xf32>, vector<4x32x16xf32>, vector<4x32x32xf32> -> vector<4x32x32xf32>
    %2 = vector.extract_strided_slice %1 {offsets = [0, 0, 0], sizes = [1, 32, 32], strides = [1, 1, 1]} : vector<4x32x32xf32> to vector<1x32x32xf32>
    %3 = vector.shape_cast %2 : vector<1x32x32xf32> to vector<32x32xf32>
    %c0_2 = arith.constant 0 : index
    %c0_3 = arith.constant 0 : index
    %4 = vector.load %arg1[%c0_2, %c0_3] : memref<32x128xf32, #tpu.memory_space<vmem>>, vector<32x32xf32>
    tpu.vector_store %arg1[%c0_2, %c0_3], %3 {strides = array<i32>} : memref<32x128xf32, #tpu.memory_space<vmem>>, vector<32x32xf32>,
    %5 = vector.extract_strided_slice %1 {offsets = [1, 0, 0], sizes = [1, 32, 32], strides = [1, 1, 1]} : vector<4x32x32xf32> to vector<1x32x32xf32>
    %6 = vector.shape_cast %5 : vector<1x32x32xf32> to vector<32x32xf32>
    %c0_4 = arith.constant 0 : index
    %c32 = arith.constant 32 : index
    %7 = vector.load %arg1[%c0_4, %c32] : memref<32x128xf32, #tpu.memory_space<vmem>>, vector<32x32xf32>
    tpu.vector_store %arg1[%c0_4, %c32], %6 {strides = array<i32>} : memref<32x128xf32, #tpu.memory_space<vmem>>, vector<32x32xf32>,
    %8 = vector.extract_strided_slice %1 {offsets = [2, 0, 0], sizes = [1, 32, 32], strides = [1, 1, 1]} : vector<4x32x32xf32> to vector<1x32x32xf32>
    %9 = vector.shape_cast %8 : vector<1x32x32xf32> to vector<32x32xf32>
    %c0_5 = arith.constant 0 : index
    %c64 = arith.constant 64 : index
    %10 = vector.load %arg1[%c0_5, %c64] : memref<32x128xf32, #tpu.memory_space<vmem>>, vector<32x32xf32>
    tpu.vector_store %arg1[%c0_5, %c64], %9 {strides = array<i32>} : memref<32x128xf32, #tpu.memory_space<vmem>>, vector<32x32xf32>,
    %11 = vector.extract_strided_slice %1 {offsets = [3, 0, 0], sizes = [1, 32, 32], strides = [1, 1, 1]} : vector<4x32x32xf32> to vector<1x32x32xf32>
    %12 = vector.shape_cast %11 : vector<1x32x32xf32> to vector<32x32xf32>
    %c0_6 = arith.constant 0 : index
    %c96 = arith.constant 96 : index
    %13 = vector.load %arg1[%c0_6, %c96] : memref<32x128xf32, #tpu.memory_space<vmem>>, vector<32x32xf32>
    tpu.vector_store %arg1[%c0_6, %c96], %12 {strides = array<i32>} : memref<32x128xf32, #tpu.memory_space<vmem>>, vector<32x32xf32>,
    return
  }
}

</mosaic_0001>

<llo_original>
// kernel: tpu_custom_call.1
$region0: #{tpu_custom_call.1}
  #allocation0 [shape = 'u32[]', space=smem, size = 0x4, offset = 0x4, fixed_abs, tag = 'smem constant byte address 0x4 - core index']
  #allocation1 [shape = 'u32[72,128]{1,0:T(1,128)}', space=vmem, size = 0x9000, scoped, tag = 'internal scratch']
  %s0 = inlined_call_operand.vmem [shape: f32[4,32,16], index: 0, kind: input, shape index: {}]
  %s1 = inlined_call_operand.hbm [shape: f32[32,128], index: 1, kind: output, shape index: {}]
  %s2 = sld [smem:[#allocation0]]
  $region14: #{tpu_custom_call.1} parent=0
    _
  %s4 = ssub.s32 1, %s2
  %s5 = scalar_select 0, %s4, %s2
  $region1: #{tpu_custom_call.1} parent=0
    #allocation2 [shape = 'u8[16384]{0}', space=vmem, size = 0x4000, scoped, tag = 'output window, operand 0, single buffered']
    #allocation3 [shape = 's32[1]{0}', space=sflag, size = 0x4, scoped, tag = 'scoped memory for tpu_custom_call.1']
    %6 = vsyncpa [#allocation3], 0
    // Predicated region
    $region2: #{tpu_custom_call.1} parent=1 // pred_check
      _
    $region3: #{tpu_custom_call.1} parent=1 // pred_check_branch
      %8 = sbr.rel (0) target = $region5
    $region4: #{tpu_custom_call.1} parent=1 // pred_region
      _
    $region5: #{tpu_custom_call.1} parent=1 // pred_fallthru
      _
    %v9 = vld [vmem:[%s0] sm:$0xff]
    %v10 = vld [vmem:[%s0 + $0x8] sm:$0xff]
    %v11 = vld [vmem:[%s0 + $0x10] sm:$0xff]
    %v12 = vld [vmem:[%s0 + $0x18] sm:$0xff]
    %v13 = vld [vmem:[%s0 + $0x20] sm:$0xff]
    %v14 = vld [vmem:[%s0 + $0x28] sm:$0xff]
    %v15 = vld [vmem:[%s0 + $0x30] sm:$0xff]
    %v16 = vld [vmem:[%s0 + $0x38] sm:$0xff]
    %v17 = vld [vmem:[%s0 + $0x40] sm:$0xff]
    %v18 = vld [vmem:[%s0 + $0x48] sm:$0xff]
    %v19 = vld [vmem:[%s0 + $0x50] sm:$0xff]
    %v20 = vld [vmem:[%s0 + $0x58] sm:$0xff]
    %v21 = vld [vmem:[%s0 + $0x60] sm:$0xff]
    %v22 = vld [vmem:[%s0 + $0x68] sm:$0xff]
    %v23 = vld [vmem:[%s0 + $0x70] sm:$0xff]
    %v24 = vld [vmem:[%s0 + $0x78] sm:$0xff]
    %vm25 = vcmask 130048
    %v27 = vsel %vm25, %v9, 0
    %v30 = vsel %vm25, %v10, 0
    %v33 = vsel %vm25, %v11, 0
    %v36 = vsel %vm25, %v12, 0
    %38 = vmatpush.xpose.msra.mxu0 0.0
    %39 = vmatpush.xpose.msra.mxu0 0.0
    %40 = vmatpush.xpose.msra.mxu0 0.0
    %41 = vmatpush.xpose.msra.mxu0 0.0
    %42 = vmatpush.xpose.msra.mxu0 0.0
    %43 = vmatpush.xpose.msra.mxu0 0.0
    %44 = vmatpush.xpose.msra.mxu0 0.0
    %45 = vmatpush.xpose.msra.mxu0 0.0
    %46 = vmatpush.xpose.msra.mxu0 0.0
    %47 = vmatpush.xpose.msra.mxu0 0.0
    %48 = vmatpush.xpose.msra.mxu0 0.0
    %49 = vmatpush.xpose.msra.mxu0 0.0
    %50 = vmatpush.xpose.msra.mxu0 %v36
    %51 = vmatpush.xpose.msra.mxu0 %v33
    %52 = vmatpush.xpose.msra.mxu0 %v30
    %53 = vmatpush.xpose.msra.mxu0 %v27
    %54 = vmatmul.f32.gmra.mxu0 %v27
    %v55 = vpop.f32.mrf.mxu0
    %v56 = vadd.f32 0.0, %v55
    %57 = vmatmul.f32.gmra.mxu0 %v30
    %v58 = vpop.f32.mrf.mxu0
    %v59 = vadd.f32 0.0, %v58
    %60 = vmatmul.f32.gmra.mxu0 %v33
    %v61 = vpop.f32.mrf.mxu0
    %v62 = vadd.f32 0.0, %v61
    %63 = vmatmul.f32.gmra.mxu0 %v36
    %v64 = vpop.f32.mrf.mxu0
    %v65 = vadd.f32 0.0, %v64
    %66 = vdwg.mxu0
    %v68 = vsel %vm25, %v13, 0
    %v71 = vsel %vm25, %v14, 0
    %v74 = vsel %vm25, %v15, 0
    %v77 = vsel %vm25, %v16, 0
    %79 = vmatpush.xpose.msra.mxu0 0.0
    %80 = vmatpush.xpose.msra.mxu0 0.0
    %81 = vmatpush.xpose.msra.mxu0 0.0
    %82 = vmatpush.xpose.msra.mxu0 0.0
    %83 = vmatpush.xpose.msra.mxu0 0.0
    %84 = vmatpush.xpose.msra.mxu0 0.0
    %85 = vmatpush.xpose.msra.mxu0 0.0
    %86 = vmatpush.xpose.msra.mxu0 0.0
    %87 = vmatpush.xpose.msra.mxu0 0.0
    %88 = vmatpush.xpose.msra.mxu0 0.0
    %89 = vmatpush.xpose.msra.mxu0 0.0
    %90 = vmatpush.xpose.msra.mxu0 0.0
    %91 = vmatpush.xpose.msra.mxu0 %v77
    %92 = vmatpush.xpose.msra.mxu0 %v74
    %93 = vmatpush.xpose.msra.mxu0 %v71
    %94 = vmatpush.xpose.msra.mxu0 %v68
    %95 = vmatmul.f32.gmra.mxu0 %v68
    %v96 = vpop.f32.mrf.mxu0
    %v97 = vadd.f32 0.0, %v96
    %98 = vmatmul.f32.gmra.mxu0 %v71
    %v99 = vpop.f32.mrf.mxu0
    %v100 = vadd.f32 0.0, %v99
    %101 = vmatmul.f32.gmra.mxu0 %v74
    %v102 = vpop.f32.mrf.mxu0
    %v103 = vadd.f32 0.0, %v102
    %104 = vmatmul.f32.gmra.mxu0 %v77
    %v105 = vpop.f32.mrf.mxu0
    %v106 = vadd.f32 0.0, %v105
    %107 = vdwg.mxu0
    %v109 = vsel %vm25, %v17, 0
    %v112 = vsel %vm25, %v18, 0
    %v115 = vsel %vm25, %v19, 0
    %v118 = vsel %vm25, %v20, 0
    %120 = vmatpush.xpose.msra.mxu0 0.0
    %121 = vmatpush.xpose.msra.mxu0 0.0
    %122 = vmatpush.xpose.msra.mxu0 0.0
    %123 = vmatpush.xpose.msra.mxu0 0.0
    %124 = vmatpush.xpose.msra.mxu0 0.0
    %125 = vmatpush.xpose.msra.mxu0 0.0
    %126 = vmatpush.xpose.msra.mxu0 0.0
    %127 = vmatpush.xpose.msra.mxu0 0.0
    %128 = vmatpush.xpose.msra.mxu0 0.0
    %129 = vmatpush.xpose.msra.mxu0 0.0
    %130 = vmatpush.xpose.msra.mxu0 0.0
    %131 = vmatpush.xpose.msra.mxu0 0.0
    %132 = vmatpush.xpose.msra.mxu0 %v118
    %133 = vmatpush.xpose.msra.mxu0 %v115
    %134 = vmatpush.xpose.msra.mxu0 %v112
    %135 = vmatpush.xpose.msra.mxu0 %v109
    %136 = vmatmul.f32.gmra.mxu0 %v109
    %v137 = vpop.f32.mrf.mxu0
    %v138 = vadd.f32 0.0, %v137
    %139 = vmatmul.f32.gmra.mxu0 %v112
    %v140 = vpop.f32.mrf.mxu0
    %v141 = vadd.f32 0.0, %v140
    %142 = vmatmul.f32.gmra.mxu0 %v115
    %v143 = vpop.f32.mrf.mxu0
    %v144 = vadd.f32 0.0, %v143
    %145 = vmatmul.f32.gmra.mxu0 %v118
    %v146 = vpop.f32.mrf.mxu0
    %v147 = vadd.f32 0.0, %v146
    %148 = vdwg.mxu0
    %v150 = vsel %vm25, %v21, 0
    %v153 = vsel %vm25, %v22, 0
    %v156 = vsel %vm25, %v23, 0
    %v159 = vsel %vm25, %v24, 0
    %161 = vmatpush.xpose.msra.mxu0 0.0
    %162 = vmatpush.xpose.msra.mxu0 0.0
    %163 = vmatpush.xpose.msra.mxu0 0.0
    %164 = vmatpush.xpose.msra.mxu0 0.0
    %165 = vmatpush.xpose.msra.mxu0 0.0
    %166 = vmatpush.xpose.msra.mxu0 0.0
    %167 = vmatpush.xpose.msra.mxu0 0.0
    %168 = vmatpush.xpose.msra.mxu0 0.0
    %169 = vmatpush.xpose.msra.mxu0 0.0
    %170 = vmatpush.xpose.msra.mxu0 0.0
    %171 = vmatpush.xpose.msra.mxu0 0.0
    %172 = vmatpush.xpose.msra.mxu0 0.0
    %173 = vmatpush.xpose.msra.mxu0 %v159
    %174 = vmatpush.xpose.msra.mxu0 %v156
    %175 = vmatpush.xpose.msra.mxu0 %v153
    %176 = vmatpush.xpose.msra.mxu0 %v150
    %177 = vmatmul.f32.gmra.mxu0 %v150
    %v178 = vpop.f32.mrf.mxu0
    %v179 = vadd.f32 0.0, %v178
    %180 = vmatmul.f32.gmra.mxu0 %v153
    %v181 = vpop.f32.mrf.mxu0
    %v182 = vadd.f32 0.0, %v181
    %183 = vmatmul.f32.gmra.mxu0 %v156
    %v184 = vpop.f32.mrf.mxu0
    %v185 = vadd.f32 0.0, %v184
    %186 = vmatmul.f32.gmra.mxu0 %v159
    %v187 = vpop.f32.mrf.mxu0
    %v188 = vadd.f32 0.0, %v187
    %189 = vdwg.mxu0
    %vm190 = vcmask 261120
    %191 = vst.msk [vmem:[#allocation2] sm:$0xff] %vm190, %v56
    %192 = vst.msk [vmem:[#allocation2 + $0x8] sm:$0xff] %vm190, %v59
    %193 = vst.msk [vmem:[#allocation2 + $0x10] sm:$0xff] %vm190, %v62
    %194 = vst.msk [vmem:[#allocation2 + $0x18] sm:$0xff] %vm190, %v65
    %199 = vrot.lane.b32.xlu0 %v97, 32
    %v200 = vpop.permute.xlu0 %199
    %201 = vrot.lane.b32.xlu0 %v100, 32
    %v202 = vpop.permute.xlu0 %201
    %203 = vrot.lane.b32.xlu0 %v103, 32
    %v204 = vpop.permute.xlu0 %203
    %205 = vrot.lane.b32.xlu0 %v106, 32
    %v206 = vpop.permute.xlu0 %205
    %vm211 = vcmask 523520
    %212 = vst.msk [vmem:[#allocation2] sm:$0xff] %vm211, %v200
    %213 = vst.msk [vmem:[#allocation2 + $0x8] sm:$0xff] %vm211, %v202
    %214 = vst.msk [vmem:[#allocation2 + $0x10] sm:$0xff] %vm211, %v204
    %215 = vst.msk [vmem:[#allocation2 + $0x18] sm:$0xff] %vm211, %v206
    %220 = vrot.lane.b32.xlu0 %v138, 64
    %v221 = vpop.permute.xlu0 %220
    %222 = vrot.lane.b32.xlu0 %v141, 64
    %v223 = vpop.permute.xlu0 %222
    %224 = vrot.lane.b32.xlu0 %v144, 64
    %v225 = vpop.permute.xlu0 %224
    %226 = vrot.lane.b32.xlu0 %v147, 64
    %v227 = vpop.permute.xlu0 %226
    %vm232 = vcmask 785920
    %233 = vst.msk [vmem:[#allocation2] sm:$0xff] %vm232, %v221
    %234 = vst.msk [vmem:[#allocation2 + $0x8] sm:$0xff] %vm232, %v223
    %235 = vst.msk [vmem:[#allocation2 + $0x10] sm:$0xff] %vm232, %v225
    %236 = vst.msk [vmem:[#allocation2 + $0x18] sm:$0xff] %vm232, %v227
    %241 = vrot.lane.b32.xlu0 %v179, 96
    %v242 = vpop.permute.xlu0 %241
    %243 = vrot.lane.b32.xlu0 %v182, 96
    %v244 = vpop.permute.xlu0 %243
    %245 = vrot.lane.b32.xlu0 %v185, 96
    %v246 = vpop.permute.xlu0 %245
    %247 = vrot.lane.b32.xlu0 %v188, 96
    %v248 = vpop.permute.xlu0 %247
    %vm253 = vcmask 1048320
    %254 = vst.msk [vmem:[#allocation2] sm:$0xff] %vm253, %v242
    %255 = vst.msk [vmem:[#allocation2 + $0x8] sm:$0xff] %vm253, %v244
    %256 = vst.msk [vmem:[#allocation2 + $0x10] sm:$0xff] %vm253, %v246
    %257 = vst.msk [vmem:[#allocation2 + $0x18] sm:$0xff] %vm253, %v248
    // Predicated region
    $region6: #{tpu_custom_call.1} parent=1 // pred_check
      _
    $region7: #{tpu_custom_call.1} parent=1 // pred_check_branch
      %259 = sbr.rel (0) target = $region9
    $region8: #{tpu_custom_call.1} parent=1 // pred_region
      %261 = vsyncadd [#allocation3], 0
      %s262 = sshll.u32 [#allocation2], 4
      %s263 = int_to_ptr.vmem [resolvable:$true] %s262
      %s264 = sshll.u32 %s1, 4
      %s265 = int_to_ptr.hbm [resolvable:$true] %s264
      %270 = dma.vmem_to_hbm [thread:$0]  %s263, 512, %s265, [#allocation3], 128, 128, 8
    $region9: #{tpu_custom_call.1} parent=1 // pred_fallthru
      _
    // Predicated region
    $region10: #{tpu_custom_call.1} parent=1 // pred_check
      _
    $region11: #{tpu_custom_call.1} parent=1 // pred_check_branch
      %272 = sbr.rel (0) target = $region13
    $region12: #{tpu_custom_call.1} parent=1 // pred_region
      %274 = dma.done [#allocation3], 512
    $region13: #{tpu_custom_call.1} parent=1 // pred_fallthru
      _
    %275 = vsyncpa [#allocation3], 1

</llo_original>
